<compile_context>
chip_gen: v7x
topology: tpu7x:2x2x1
jax: 0.10.0
libtpu: 0.0.40
codegen_flags: <defaults>
</compile_context>

<pallas_src>
import functools
import math

import jax
import jax.numpy as jnp
from jax.experimental import pallas as pl
from jax.experimental.pallas import tpu as pltpu  # noqa: F401  (TPU backend)


def _round_up(n: int, m: int) -> int:
    return ((n + m - 1) // m) * m


def _pad2d(x, rows: int, cols: int):
    r, c = x.shape
    return jnp.pad(x, ((0, rows - r), (0, cols - c)))


def _fused_mlp_kernel(*refs, num_linear: int):
    """Whole-MLP forward on fully VMEM-resident, (8,128)-padded tiles.

    refs = (x, w0, b0, w1, b1, ..., w_{L-1}, b_{L-1}, out)
    Hidden linears (i < num_linear - 1) get a ReLU; the output linear does not.
    Only the final result is stored (single unmasked lane-dense store).
    """
    x_ref = refs[0]
    o_ref = refs[-1]
    wb = refs[1:-1]

    h = x_ref[...]                                    # f32 [Bp, D0p]
    for i in range(num_linear):
        w_ref = wb[2 * i]                             # bf16 [Dip, Dop]
        b_ref = wb[2 * i + 1]                         # f32  [1,  Dop]
        acc = jnp.dot(h.astype(jnp.bfloat16), w_ref[...],
                      preferred_element_type=jnp.float32)   # MXU bf16, f32 acc
        acc = acc + b_ref[...]                        # bias-add in f32 (VPU)
        if i < num_linear - 1:
            acc = jnp.maximum(acc, 0.0)               # ReLU (Dropout == id, eval)
        h = acc
    o_ref[...] = h                                    # already f32; no astype


def mlp_forward(x, params):
    """Fused MLP forward.

    x: [..., D_in] f32 (leading dims are flattened, nn.Linear-style).
    params: list of (w [D_in_i, D_out_i] f32, b [1, D_out_i] f32); the last
    entry is the output Linear (no activation).
    Returns [..., D_out_last] f32.
    """
    lead_shape = x.shape[:-1]
    d_in = x.shape[-1]
    x2 = x.reshape(-1, d_in)
    B = x2.shape[0]

    num_linear = len(params)
    dims = [d_in] + [w.shape[1] for (w, _) in params]
    dims_p = [_round_up(d, 128) for d in dims]        # lane-dense feature axes
    b_p = _round_up(max(B, 1), 8)                     # sublane-aligned batch

    x_pad = _pad2d(x2, b_p, dims_p[0])

    flat_inputs = [x_pad]
    in_specs = [pl.BlockSpec((b_p, dims_p[0]), lambda: (0, 0))]
    for i, (w, b) in enumerate(params):
        w_pad = _pad2d(w, dims_p[i], dims_p[i + 1]).astype(jnp.bfloat16)
        b_pad = _pad2d(b, 1, dims_p[i + 1])           # bias stays f32
        flat_inputs += [w_pad, b_pad]
        in_specs += [
            pl.BlockSpec((dims_p[i], dims_p[i + 1]), lambda: (0, 0)),
            pl.BlockSpec((1, dims_p[i + 1]), lambda: (0, 0)),
        ]

    out_pad = pl.pallas_call(
        functools.partial(_fused_mlp_kernel, num_linear=num_linear),
        out_shape=jax.ShapeDtypeStruct((b_p, dims_p[-1]), jnp.float32),
        in_specs=in_specs,
        out_specs=pl.BlockSpec((b_p, dims_p[-1]), lambda: (0, 0)),
    )(*flat_inputs)

    out = out_pad[:B, :dims[-1]]
    return out.reshape(*lead_shape, dims[-1])


def init_mlp_params(key, input_dim, output_dim, layers, gain=0.01):
    """Deterministic parameter init matching the PyTorch module's __init__.

    Hidden Linear layers: PyTorch default U(-1/sqrt(fan_in), 1/sqrt(fan_in)).
    Output layer: Xavier uniform with `gain`; bias zeroed here for determinism.
    """
    params = []
    curr = input_dim
    for layer_dim in layers:
        key, kw, kb = jax.random.split(key, 3)
        bound = 1.0 / math.sqrt(curr)
        w = jax.random.uniform(kw, (curr, layer_dim), jnp.float32, -bound, bound)
        b = jax.random.uniform(kb, (1, layer_dim), jnp.float32, -bound, bound)
        params.append((w, b))
        curr = layer_dim
    key, kw = jax.random.split(key)
    a = gain * math.sqrt(6.0 / (curr + output_dim))
    w_out = jax.random.uniform(kw, (curr, output_dim), jnp.float32, -a, a)
    b_out = jnp.zeros((1, output_dim), jnp.float32)
    params.append((w_out, b_out))
    return params


def mlp_reference(x, params, *, bf16_matmul):
    """Pure-JAX reference. bf16_matmul=True mirrors the kernel's MXU recipe."""
    h = x
    n = len(params)
    for i, (w, b) in enumerate(params):
        if bf16_matmul:
            h = jnp.dot(h.astype(jnp.bfloat16), w.astype(jnp.bfloat16),
                        preferred_element_type=jnp.float32)
        else:
            h = jnp.dot(h, w, preferred_element_type=jnp.float32)
        h = h + b[0]
        if i != n - 1:
            h = jnp.maximum(h, 0.0)
    return h


if __name__ == "__main__":
    key = jax.random.PRNGKey(0)
    k_x, k_p = jax.random.split(key)

    batch = 8
    input_dim = 16
    layers = [32, 32]
    output_dim = 10

    x = jax.random.normal(k_x, (batch, input_dim), jnp.float32)
    params = init_mlp_params(k_p, input_dim, output_dim, layers, gain=0.01)

    fwd = jax.jit(mlp_forward)
    out = jax.block_until_ready(fwd(x, params))
    assert out.shape == (batch, output_dim)

    # Strong check: reference using the same bf16-matmul / f32-accumulate
    # recipe as the kernel (zero padding does not change the math).
    ref_bf16 = mlp_reference(x, params, bf16_matmul=True)
    assert jnp.allclose(out, ref_bf16, atol=1e-4, rtol=1e-3), \
        "mismatch vs bf16-matmul reference"

    # Sanity check against full-f32 math (PyTorch-equivalent), with tolerance
    # for the deliberate bf16 weight/activation rounding.
    ref_f32 = mlp_reference(x, params, bf16_matmul=False)
    assert jnp.allclose(out, ref_f32, atol=1e-3, rtol=5e-2), \
        "mismatch vs f32 reference"

    print("KERNEL_OK")
</pallas_src>

<mosaic_0001>
module attributes {stable_mosaic.version = 11 : i64} {
  func.func @_fused_mlp_kernel(%arg0: memref<8x128xf32, #tpu.memory_space<vmem>>, %arg1: memref<128x128xbf16, #tpu.memory_space<vmem>>, %arg2: memref<1x128xf32, #tpu.memory_space<vmem>>, %arg3: memref<128x128xbf16, #tpu.memory_space<vmem>>, %arg4: memref<1x128xf32, #tpu.memory_space<vmem>>, %arg5: memref<128x128xbf16, #tpu.memory_space<vmem>>, %arg6: memref<1x128xf32, #tpu.memory_space<vmem>>, %arg7: memref<8x128xf32, #tpu.memory_space<vmem>>) attributes {dimension_semantics = [], scalar_prefetch = 0 : i64, scratch_operands = 0 : i64, tpu.core_type = #tpu.core_type<tc>} {
    %c0 = arith.constant 0 : index
    %c0_0 = arith.constant 0 : index
    %0 = vector.load %arg0[%c0, %c0_0] : memref<8x128xf32, #tpu.memory_space<vmem>>, vector<8x128xf32>
    %1 = arith.truncf %0 : vector<8x128xf32> to vector<8x128xbf16>
    %c0_1 = arith.constant 0 : index
    %c0_2 = arith.constant 0 : index
    %2 = vector.load %arg1[%c0_1, %c0_2] : memref<128x128xbf16, #tpu.memory_space<vmem>>, vector<128x128xbf16>
    %cst = arith.constant dense<0.000000e+00> : vector<8x128xf32>
    %3 = tpu.matmul %1, %2, %cst {dimension_numbers = #tpu.dot_dimension_numbers<[1], [0], [0], [1], [0, 0, 1, 1], [], []>} : vector<8x128xbf16>, vector<128x128xbf16>, vector<8x128xf32> -> vector<8x128xf32>
    %c0_3 = arith.constant 0 : index
    %c0_4 = arith.constant 0 : index
    %4 = vector.load %arg2[%c0_3, %c0_4] : memref<1x128xf32, #tpu.memory_space<vmem>>, vector<1x128xf32>
    %5 = vector.broadcast %4 : vector<1x128xf32> to vector<8x128xf32>
    %6 = arith.addf %3, %5 : vector<8x128xf32>
    %cst_5 = arith.constant 0.000000e+00 : f32
    %7 = vector.broadcast %cst_5 : f32 to vector<8x128xf32>
    %8 = arith.maximumf %6, %7 : vector<8x128xf32>
    %9 = arith.truncf %8 : vector<8x128xf32> to vector<8x128xbf16>
    %c0_6 = arith.constant 0 : index
    %c0_7 = arith.constant 0 : index
    %10 = vector.load %arg3[%c0_6, %c0_7] : memref<128x128xbf16, #tpu.memory_space<vmem>>, vector<128x128xbf16>
    %cst_8 = arith.constant dense<0.000000e+00> : vector<8x128xf32>
    %11 = tpu.matmul %9, %10, %cst_8 {dimension_numbers = #tpu.dot_dimension_numbers<[1], [0], [0], [1], [0, 0, 1, 1], [], []>} : vector<8x128xbf16>, vector<128x128xbf16>, vector<8x128xf32> -> vector<8x128xf32>
    %c0_9 = arith.constant 0 : index
    %c0_10 = arith.constant 0 : index
    %12 = vector.load %arg4[%c0_9, %c0_10] : memref<1x128xf32, #tpu.memory_space<vmem>>, vector<1x128xf32>
    %13 = vector.broadcast %12 : vector<1x128xf32> to vector<8x128xf32>
    %14 = arith.addf %11, %13 : vector<8x128xf32>
    %cst_11 = arith.constant 0.000000e+00 : f32
    %15 = vector.broadcast %cst_11 : f32 to vector<8x128xf32>
    %16 = arith.maximumf %14, %15 : vector<8x128xf32>
    %17 = arith.truncf %16 : vector<8x128xf32> to vector<8x128xbf16>
    %c0_12 = arith.constant 0 : index
    %c0_13 = arith.constant 0 : index
    %18 = vector.load %arg5[%c0_12, %c0_13] : memref<128x128xbf16, #tpu.memory_space<vmem>>, vector<128x128xbf16>
    %cst_14 = arith.constant dense<0.000000e+00> : vector<8x128xf32>
    %19 = tpu.matmul %17, %18, %cst_14 {dimension_numbers = #tpu.dot_dimension_numbers<[1], [0], [0], [1], [0, 0, 1, 1], [], []>} : vector<8x128xbf16>, vector<128x128xbf16>, vector<8x128xf32> -> vector<8x128xf32>
    %c0_15 = arith.constant 0 : index
    %c0_16 = arith.constant 0 : index
    %20 = vector.load %arg6[%c0_15, %c0_16] : memref<1x128xf32, #tpu.memory_space<vmem>>, vector<1x128xf32>
    %21 = vector.broadcast %20 : vector<1x128xf32> to vector<8x128xf32>
    %22 = arith.addf %19, %21 : vector<8x128xf32>
    %c0_17 = arith.constant 0 : index
    %c0_18 = arith.constant 0 : index
    %23 = vector.load %arg7[%c0_17, %c0_18] : memref<8x128xf32, #tpu.memory_space<vmem>>, vector<8x128xf32>
    tpu.vector_store %arg7[%c0_17, %c0_18], %22 {strides = array<i32>} : memref<8x128xf32, #tpu.memory_space<vmem>>, vector<8x128xf32>,
    return
  }
}

</mosaic_0001>

<llo_original>
// kernel: mlp_forward.1
$region0: #{mlp_forward.1}
  #allocation0 [shape = 'u32[]', space=smem, size = 0x4, offset = 0x4, fixed_abs, tag = 'smem constant byte address 0x4 - core index']
  #allocation1 [shape = 'u32[144,128]{1,0:T(1,128)}', space=vmem, size = 0x12000, scoped, tag = 'internal scratch']
  %s0 = inlined_call_operand.vmem [shape: f32[8,128], index: 0, kind: input, shape index: {}]
  %s1 = inlined_call_operand.vmem [shape: bf16[128,128], index: 1, kind: input, shape index: {}]
  %s2 = inlined_call_operand.vmem [shape: f32[1,128], index: 2, kind: input, shape index: {}]
  %s3 = inlined_call_operand.vmem [shape: bf16[128,128], index: 3, kind: input, shape index: {}]
  %s4 = inlined_call_operand.vmem [shape: f32[1,128], index: 4, kind: input, shape index: {}]
  %s5 = inlined_call_operand.vmem [shape: bf16[128,128], index: 5, kind: input, shape index: {}]
  %s6 = inlined_call_operand.vmem [shape: f32[1,128], index: 6, kind: input, shape index: {}]
  %s7 = inlined_call_operand.hbm [shape: f32[8,128], index: 7, kind: output, shape index: {}]
  %s8 = sld [smem:[#allocation0]]
  $region38: #{mlp_forward.1} parent=0
    _
  %s10 = ssub.s32 1, %s8
  %s11 = scalar_select 0, %s10, %s8
  $region1: #{mlp_forward.1} parent=0
    #allocation2 [shape = 'u8[4096]{0}', space=vmem, size = 0x1000, scoped, tag = 'output window, operand 0, single buffered']
    #allocation3 [shape = 's32[1]{0}', space=sflag, size = 0x4, scoped, tag = 'scoped memory for mlp_forward.1']
    %12 = vsyncpa [#allocation3], 0
    // Predicated region
    $region2: #{mlp_forward.1} parent=1 // pred_check
      _
    $region3: #{mlp_forward.1} parent=1 // pred_check_branch
      %14 = sbr.rel (0) target = $region5
    $region4: #{mlp_forward.1} parent=1 // pred_region
      _
    $region5: #{mlp_forward.1} parent=1 // pred_fallthru
      _
    // Predicated region
    $region6: #{mlp_forward.1} parent=1 // pred_check
      _
    $region7: #{mlp_forward.1} parent=1 // pred_check_branch
      %16 = sbr.rel (0) target = $region9
    $region8: #{mlp_forward.1} parent=1 // pred_region
      _
    $region9: #{mlp_forward.1} parent=1 // pred_fallthru
      _
    // Predicated region
    $region10: #{mlp_forward.1} parent=1 // pred_check
      _
    $region11: #{mlp_forward.1} parent=1 // pred_check_branch
      %18 = sbr.rel (0) target = $region13
    $region12: #{mlp_forward.1} parent=1 // pred_region
      _
    $region13: #{mlp_forward.1} parent=1 // pred_fallthru
      _
    // Predicated region
    $region14: #{mlp_forward.1} parent=1 // pred_check
      _
    $region15: #{mlp_forward.1} parent=1 // pred_check_branch
      %20 = sbr.rel (0) target = $region17
    $region16: #{mlp_forward.1} parent=1 // pred_region
      _
    $region17: #{mlp_forward.1} parent=1 // pred_fallthru
      _
    // Predicated region
    $region18: #{mlp_forward.1} parent=1 // pred_check
      _
    $region19: #{mlp_forward.1} parent=1 // pred_check_branch
      %22 = sbr.rel (0) target = $region21
    $region20: #{mlp_forward.1} parent=1 // pred_region
      _
    $region21: #{mlp_forward.1} parent=1 // pred_fallthru
      _
    // Predicated region
    $region22: #{mlp_forward.1} parent=1 // pred_check
      _
    $region23: #{mlp_forward.1} parent=1 // pred_check_branch
      %24 = sbr.rel (0) target = $region25
    $region24: #{mlp_forward.1} parent=1 // pred_region
      _
    $region25: #{mlp_forward.1} parent=1 // pred_fallthru
      _
    // Predicated region
    $region26: #{mlp_forward.1} parent=1 // pred_check
      _
    $region27: #{mlp_forward.1} parent=1 // pred_check_branch
      %26 = sbr.rel (0) target = $region29
    $region28: #{mlp_forward.1} parent=1 // pred_region
      _
    $region29: #{mlp_forward.1} parent=1 // pred_fallthru
      _
    %v28 = vld [vmem:[%s0] sm:$0xff]
    %v29 = vpack.c.bf16 %v28, %v28
    %v30 = vld [vmem:[%s1] sm:$0xf]
    %v31 = vld [vmem:[%s1 + $0x4] sm:$0xf]
    %v32 = vld [vmem:[%s1 + $0x8] sm:$0xf]
    %v33 = vld [vmem:[%s1 + $0xc] sm:$0xf]
    %v34 = vld [vmem:[%s1 + $0x10] sm:$0xf]
    %v35 = vld [vmem:[%s1 + $0x14] sm:$0xf]
    %v36 = vld [vmem:[%s1 + $0x18] sm:$0xf]
    %v37 = vld [vmem:[%s1 + $0x1c] sm:$0xf]
    %v38 = vld [vmem:[%s1 + $0x20] sm:$0xf]
    %v39 = vld [vmem:[%s1 + $0x24] sm:$0xf]
    %v40 = vld [vmem:[%s1 + $0x28] sm:$0xf]
    %v41 = vld [vmem:[%s1 + $0x2c] sm:$0xf]
    %v42 = vld [vmem:[%s1 + $0x30] sm:$0xf]
    %v43 = vld [vmem:[%s1 + $0x34] sm:$0xf]
    %v44 = vld [vmem:[%s1 + $0x38] sm:$0xf]
    %v45 = vld [vmem:[%s1 + $0x3c] sm:$0xf]
    %v46 = vld [vmem:[%s2] sm:$0x1]
    %v48 = vlaneseq
    %v49 = vshrl.u32 %v48, 7
    %v50 = vsub.s32 0, %v49
    %v51 = vrot.slane %v46, %v50
    %v69 = vunpack.c.l.b16 %v30
    %v70 = vunpack.c.l.b16 %v31
    %v71 = vunpack.c.l.b16 %v32
    %v72 = vunpack.c.l.b16 %v33
    %v73 = vunpack.c.l.b16 %v34
    %v74 = vunpack.c.l.b16 %v35
    %v75 = vunpack.c.l.b16 %v36
    %v76 = vunpack.c.l.b16 %v37
    %v77 = vunpack.c.l.b16 %v38
    %v78 = vunpack.c.l.b16 %v39
    %v79 = vunpack.c.l.b16 %v40
    %v80 = vunpack.c.l.b16 %v41
    %v81 = vunpack.c.l.b16 %v42
    %v82 = vunpack.c.l.b16 %v43
    %v83 = vunpack.c.l.b16 %v44
    %v84 = vunpack.c.l.b16 %v45
    %v85 = vpack.c.b16 %v70, %v69
    %v86 = vpack.c.b16 %v72, %v71
    %v87 = vpack.c.b16 %v74, %v73
    %v88 = vpack.c.b16 %v76, %v75
    %v89 = vpack.c.b16 %v78, %v77
    %v90 = vpack.c.b16 %v80, %v79
    %v91 = vpack.c.b16 %v82, %v81
    %v92 = vpack.c.b16 %v84, %v83
    %101 = vmatprep.subr.bf16.mxu0 0
    %102 = vmatpush1.bf16.msra.mxu0 %v85
    %103 = vmatprep.subr.bf16.mxu0 0
    %104 = vmatpush1.bf16.msra.mxu0 %v86
    %105 = vmatprep.subr.bf16.mxu0 0
    %106 = vmatpush1.bf16.msra.mxu0 %v87
    %107 = vmatprep.subr.bf16.mxu0 0
    %108 = vmatpush1.bf16.msra.mxu0 %v88
    %109 = vmatprep.subr.bf16.mxu0 0
    %110 = vmatpush1.bf16.msra.mxu0 %v89
    %111 = vmatprep.subr.bf16.mxu0 0
    %112 = vmatpush1.bf16.msra.mxu0 %v90
    %113 = vmatprep.subr.bf16.mxu0 0
    %114 = vmatpush1.bf16.msra.mxu0 %v91
    %115 = vmatprep.subr.bf16.mxu0 0
    %116 = vmatpush1.bf16.msra.mxu0 %v92
    %117 = vmatprep.subr.bf16.mxu0 0
    %118 = vmatpush1.bf16.msra.mxu0 0
    %119 = vmatprep.subr.bf16.mxu0 0
    %120 = vmatpush1.bf16.msra.mxu0 0
    %121 = vmatprep.subr.bf16.mxu0 0
    %122 = vmatpush1.bf16.msra.mxu0 0
    %123 = vmatprep.subr.bf16.mxu0 0
    %124 = vmatpush1.bf16.msra.mxu0 0
    %125 = vmatprep.subr.bf16.mxu0 0
    %126 = vmatpush1.bf16.msra.mxu0 0
    %127 = vmatprep.subr.bf16.mxu0 0
    %128 = vmatpush1.bf16.msra.mxu0 0
    %129 = vmatprep.subr.bf16.mxu0 0
    %130 = vmatpush1.bf16.msra.mxu0 0
    %131 = vmatprep.subr.bf16.mxu0 0
    %132 = vmatpush1.bf16.msra.mxu0 0
    %133 = vmatprep.mubr.bf16.mxu0 0
    %134 = vmatmul.mubr.bf16.gmra.mrb[0].mxu0 %v29
    %v135 = vpop.f32.mrb[0].mxu0
    %v136 = vadd.f32 %v51, %v135
    %v137 = vpop.f32.mrb[0].mxu0
    %v138 = vpop.f32.mrb[0].mxu0
    %v139 = vpop.f32.mrb[0].mxu0
    %140 = vdwg.mxu0
    %v141 = vmax.f32 %v136, 0.0
    %v142 = vpack.c.bf16 %v141, %v141
    %v143 = vld [vmem:[%s3] sm:$0xf]
    %v144 = vld [vmem:[%s3 + $0x4] sm:$0xf]
    %v145 = vld [vmem:[%s3 + $0x8] sm:$0xf]
    %v146 = vld [vmem:[%s3 + $0xc] sm:$0xf]
    %v147 = vld [vmem:[%s3 + $0x10] sm:$0xf]
    %v148 = vld [vmem:[%s3 + $0x14] sm:$0xf]
    %v149 = vld [vmem:[%s3 + $0x18] sm:$0xf]
    %v150 = vld [vmem:[%s3 + $0x1c] sm:$0xf]
    %v151 = vld [vmem:[%s3 + $0x20] sm:$0xf]
    %v152 = vld [vmem:[%s3 + $0x24] sm:$0xf]
    %v153 = vld [vmem:[%s3 + $0x28] sm:$0xf]
    %v154 = vld [vmem:[%s3 + $0x2c] sm:$0xf]
    %v155 = vld [vmem:[%s3 + $0x30] sm:$0xf]
    %v156 = vld [vmem:[%s3 + $0x34] sm:$0xf]
    %v157 = vld [vmem:[%s3 + $0x38] sm:$0xf]
    %v158 = vld [vmem:[%s3 + $0x3c] sm:$0xf]
    %v159 = vld [vmem:[%s4] sm:$0x1]
    %v161 = vlaneseq
    %v162 = vshrl.u32 %v161, 7
    %v163 = vsub.s32 0, %v162
    %v164 = vrot.slane %v159, %v163
    %v182 = vunpack.c.l.b16 %v143
    %v183 = vunpack.c.l.b16 %v144
    %v184 = vunpack.c.l.b16 %v145
    %v185 = vunpack.c.l.b16 %v146
    %v186 = vunpack.c.l.b16 %v147
    %v187 = vunpack.c.l.b16 %v148
    %v188 = vunpack.c.l.b16 %v149
    %v189 = vunpack.c.l.b16 %v150
    %v190 = vunpack.c.l.b16 %v151
    %v191 = vunpack.c.l.b16 %v152
    %v192 = vunpack.c.l.b16 %v153
    %v193 = vunpack.c.l.b16 %v154
    %v194 = vunpack.c.l.b16 %v155
    %v195 = vunpack.c.l.b16 %v156
    %v196 = vunpack.c.l.b16 %v157
    %v197 = vunpack.c.l.b16 %v158
    %v198 = vpack.c.b16 %v183, %v182
    %v199 = vpack.c.b16 %v185, %v184
    %v200 = vpack.c.b16 %v187, %v186
    %v201 = vpack.c.b16 %v189, %v188
    %v202 = vpack.c.b16 %v191, %v190
    %v203 = vpack.c.b16 %v193, %v192
    %v204 = vpack.c.b16 %v195, %v194
    %v205 = vpack.c.b16 %v197, %v196
    %214 = vmatprep.subr.bf16.mxu0 0
    %215 = vmatpush1.bf16.msra.mxu0 %v198
    %216 = vmatprep.subr.bf16.mxu0 0
    %217 = vmatpush1.bf16.msra.mxu0 %v199
    %218 = vmatprep.subr.bf16.mxu0 0
    %219 = vmatpush1.bf16.msra.mxu0 %v200
    %220 = vmatprep.subr.bf16.mxu0 0
    %221 = vmatpush1.bf16.msra.mxu0 %v201
    %222 = vmatprep.subr.bf16.mxu0 0
    %223 = vmatpush1.bf16.msra.mxu0 %v202
    %224 = vmatprep.subr.bf16.mxu0 0
    %225 = vmatpush1.bf16.msra.mxu0 %v203
    %226 = vmatprep.subr.bf16.mxu0 0
    %227 = vmatpush1.bf16.msra.mxu0 %v204
    %228 = vmatprep.subr.bf16.mxu0 0
    %229 = vmatpush1.bf16.msra.mxu0 %v205
    %230 = vmatprep.subr.bf16.mxu0 0
    %231 = vmatpush1.bf16.msra.mxu0 0
    %232 = vmatprep.subr.bf16.mxu0 0
    %233 = vmatpush1.bf16.msra.mxu0 0
    %234 = vmatprep.subr.bf16.mxu0 0
    %235 = vmatpush1.bf16.msra.mxu0 0
    %236 = vmatprep.subr.bf16.mxu0 0
    %237 = vmatpush1.bf16.msra.mxu0 0
    %238 = vmatprep.subr.bf16.mxu0 0
    %239 = vmatpush1.bf16.msra.mxu0 0
    %240 = vmatprep.subr.bf16.mxu0 0
    %241 = vmatpush1.bf16.msra.mxu0 0
    %242 = vmatprep.subr.bf16.mxu0 0
    %243 = vmatpush1.bf16.msra.mxu0 0
    %244 = vmatprep.subr.bf16.mxu0 0
    %245 = vmatpush1.bf16.msra.mxu0 0
    %246 = vmatprep.mubr.bf16.mxu0 0
    %247 = vmatmul.mubr.bf16.gmra.mrb[0].mxu0 %v142
    %v248 = vpop.f32.mrb[0].mxu0
    %v249 = vadd.f32 %v164, %v248
    %v250 = vpop.f32.mrb[0].mxu0
    %v251 = vpop.f32.mrb[0].mxu0
    %v252 = vpop.f32.mrb[0].mxu0
    %253 = vdwg.mxu0
    %v254 = vmax.f32 %v249, 0.0
    %v255 = vpack.c.bf16 %v254, %v254
    %v256 = vld [vmem:[%s5] sm:$0xf]
    %v257 = vld [vmem:[%s5 + $0x4] sm:$0xf]
    %v258 = vld [vmem:[%s5 + $0x8] sm:$0xf]
    %v259 = vld [vmem:[%s5 + $0xc] sm:$0xf]
    %v260 = vld [vmem:[%s5 + $0x10] sm:$0xf]
    %v261 = vld [vmem:[%s5 + $0x14] sm:$0xf]
    %v262 = vld [vmem:[%s5 + $0x18] sm:$0xf]
    %v263 = vld [vmem:[%s5 + $0x1c] sm:$0xf]
    %v264 = vld [vmem:[%s5 + $0x20] sm:$0xf]
    %v265 = vld [vmem:[%s5 + $0x24] sm:$0xf]
    %v266 = vld [vmem:[%s5 + $0x28] sm:$0xf]
    %v267 = vld [vmem:[%s5 + $0x2c] sm:$0xf]
    %v268 = vld [vmem:[%s5 + $0x30] sm:$0xf]
    %v269 = vld [vmem:[%s5 + $0x34] sm:$0xf]
    %v270 = vld [vmem:[%s5 + $0x38] sm:$0xf]
    %v271 = vld [vmem:[%s5 + $0x3c] sm:$0xf]
    %v272 = vld [vmem:[%s6] sm:$0x1]
    %v274 = vlaneseq
    %v275 = vshrl.u32 %v274, 7
    %v276 = vsub.s32 0, %v275
    %v277 = vrot.slane %v272, %v276
    %v295 = vunpack.c.l.b16 %v256
    %v296 = vunpack.c.l.b16 %v257
    %v297 = vunpack.c.l.b16 %v258
    %v298 = vunpack.c.l.b16 %v259
    %v299 = vunpack.c.l.b16 %v260
    %v300 = vunpack.c.l.b16 %v261
    %v301 = vunpack.c.l.b16 %v262
    %v302 = vunpack.c.l.b16 %v263
    %v303 = vunpack.c.l.b16 %v264
    %v304 = vunpack.c.l.b16 %v265
    %v305 = vunpack.c.l.b16 %v266
    %v306 = vunpack.c.l.b16 %v267
    %v307 = vunpack.c.l.b16 %v268
    %v308 = vunpack.c.l.b16 %v269
    %v309 = vunpack.c.l.b16 %v270
    %v310 = vunpack.c.l.b16 %v271
    %v311 = vpack.c.b16 %v296, %v295
    %v312 = vpack.c.b16 %v298, %v297
    %v313 = vpack.c.b16 %v300, %v299
    %v314 = vpack.c.b16 %v302, %v301
    %v315 = vpack.c.b16 %v304, %v303
    %v316 = vpack.c.b16 %v306, %v305
    %v317 = vpack.c.b16 %v308, %v307
    %v318 = vpack.c.b16 %v310, %v309
    %327 = vmatprep.subr.bf16.mxu0 0
    %328 = vmatpush1.bf16.msra.mxu0 %v311
    %329 = vmatprep.subr.bf16.mxu0 0
    %330 = vmatpush1.bf16.msra.mxu0 %v312
    %331 = vmatprep.subr.bf16.mxu0 0
    %332 = vmatpush1.bf16.msra.mxu0 %v313
    %333 = vmatprep.subr.bf16.mxu0 0
    %334 = vmatpush1.bf16.msra.mxu0 %v314
    %335 = vmatprep.subr.bf16.mxu0 0
    %336 = vmatpush1.bf16.msra.mxu0 %v315
    %337 = vmatprep.subr.bf16.mxu0 0
    %338 = vmatpush1.bf16.msra.mxu0 %v316
    %339 = vmatprep.subr.bf16.mxu0 0
    %340 = vmatpush1.bf16.msra.mxu0 %v317
    %341 = vmatprep.subr.bf16.mxu0 0
    %342 = vmatpush1.bf16.msra.mxu0 %v318
    %343 = vmatprep.subr.bf16.mxu0 0
    %344 = vmatpush1.bf16.msra.mxu0 0
    %345 = vmatprep.subr.bf16.mxu0 0
    %346 = vmatpush1.bf16.msra.mxu0 0
    %347 = vmatprep.subr.bf16.mxu0 0
    %348 = vmatpush1.bf16.msra.mxu0 0
    %349 = vmatprep.subr.bf16.mxu0 0
    %350 = vmatpush1.bf16.msra.mxu0 0
    %351 = vmatprep.subr.bf16.mxu0 0
    %352 = vmatpush1.bf16.msra.mxu0 0
    %353 = vmatprep.subr.bf16.mxu0 0
    %354 = vmatpush1.bf16.msra.mxu0 0
    %355 = vmatprep.subr.bf16.mxu0 0
    %356 = vmatpush1.bf16.msra.mxu0 0
    %357 = vmatprep.subr.bf16.mxu0 0
    %358 = vmatpush1.bf16.msra.mxu0 0
    %359 = vmatprep.mubr.bf16.mxu0 0
    %360 = vmatmul.mubr.bf16.gmra.mrb[0].mxu0 %v255
    %v361 = vpop.f32.mrb[0].mxu0
    %v362 = vadd.f32 %v277, %v361
    %v363 = vpop.f32.mrb[0].mxu0
    %v364 = vpop.f32.mrb[0].mxu0
    %v365 = vpop.f32.mrb[0].mxu0
    %366 = vdwg.mxu0
    %367 = vst [vmem:[#allocation2] sm:$0xff] %v362
    // Predicated region
    $region30: #{mlp_forward.1} parent=1 // pred_check
      _
    $region31: #{mlp_forward.1} parent=1 // pred_check_branch
      %369 = sbr.rel (0) target = $region33
    $region32: #{mlp_forward.1} parent=1 // pred_region
      %s371 = ssub.s32 128, 128
      %372 = vsyncadd [#allocation3], %s371
      %s374 = sshll.u32 [#allocation2], 4
      %s375 = int_to_ptr.vmem [resolvable:$true] %s374
      %377 = dma.vmem_to_hbm [thread:$0]  %s375, 128, %s7, [#allocation3]
    $region33: #{mlp_forward.1} parent=1 // pred_fallthru
      _
    // Predicated region
    $region34: #{mlp_forward.1} parent=1 // pred_check
      _
    $region35: #{mlp_forward.1} parent=1 // pred_check_branch
      %379 = sbr.rel (0) target = $region37
    $region36: #{mlp_forward.1} parent=1 // pred_region
      %380 = dma.done [#allocation3], 128
    $region37: #{mlp_forward.1} parent=1 // pred_fallthru
      _
    %381 = vsyncpa [#allocation3], 1

</llo_original>
